<compile_context>
chip_gen: v6e
topology: v6e:2x2x1
jax: 0.10.0
libtpu: 0.0.40
codegen_flags: <defaults>
</compile_context>

<pallas_src>
import functools

import numpy as np
import jax
import jax.numpy as jnp
from jax import lax
from jax.experimental import pallas as pl
from jax.experimental.pallas import tpu as pltpu

# ---- small, TPU-friendly hyperparameters (scaled-down from the module) ----
VOCAB_SIZE = 128   # len(chars) in the original script (synthetic here)
N_EMBD     = 128   # n_embd (384 in the original; scaled down, lane-aligned)
HEAD_SIZE  = 128   # Head(n_embd) -> head_size == n_embd
BLOCK_SIZE = 16    # block_size (256 in original); only [:T] rows are used
B, T       = 2, 8  # batch, sequence length for the example run


def _biagram_kernel(idx_ref, tok_tab_ref, pos_ref, bias_ref, wfused_ref, blm_ref,
                    logits_ref, x_scr):
    """Forward: tok gather -> (+pos) -> fused [q|k|vlogits] proj -> attn -> +bias."""
    bt = idx_ref.shape[0]                       # B*T (idx lives in SMEM)
    v = blm_ref.shape[1]                        # vocab size
    h = (wfused_ref.shape[1] - v) // 2          # head size

    # --- token embedding: SMEM-indexed dynamic row gather (no MXU, no one-hot)
    for i in range(bt):                         # static unroll; bt is small
        tok = idx_ref[i]
        x_scr[pl.ds(i, 1), :] = tok_tab_ref[pl.ds(tok, 1), :]

    # --- one vectorized positional add (f32 VPU), cast once for the MXU ------
    x_bf = (x_scr[...] + pos_ref[...]).astype(jnp.bfloat16)        # (B*T, C)

    # --- fused projection: one (B*T, C) @ (C, 2H+V) MXU pass -----------------
    # columns: [ q (H) | k (H) | value-logits (V) ]  where vlogits = x @ Wv @ Wlm
    fused = jnp.dot(x_bf, wfused_ref[...], preferred_element_type=jnp.float32)
    q = fused[:, 0:h]
    k = fused[:, h:2 * h]
    vlogits = fused[:, 2 * h:2 * h + v]

    # --- attention scores over the flattened B*T axis (single MXU pass) ------
    # NOTE: the reference Head applies no 1/sqrt(head_size) scaling; matched.
    scores = lax.dot_general(q.astype(jnp.bfloat16), k.astype(jnp.bfloat16),
                             (((1,), (1,)), ((), ())),
                             preferred_element_type=jnp.float32)    # (B*T, B*T)
    scores = scores + bias_ref[...]             # causal + same-batch additive mask

    # --- softmax over last axis (f32 VPU math; recip on the EUP slot) --------
    m = jnp.max(scores, axis=-1, keepdims=True)
    e = jnp.exp(scores - m)
    s = jnp.sum(e, axis=-1, keepdims=True)
    wei = e * pl.reciprocal(s, approx=True)
    # TODO(synk): nn.Dropout(0.2) is identity in eval/inference mode; not applied.

    # --- logits = wei @ (x @ Wv @ Wlm) + b_lm  (lm_head matmul pre-fused) ----
    logits_ref[...] = (jnp.dot(wei.astype(jnp.bfloat16),
                               vlogits.astype(jnp.bfloat16),
                               preferred_element_type=jnp.float32)
                       + blm_ref[...])          # lane-dense 2-D store (B*T, V)


def init_params(key):
    """Deterministic parameter init matching the module's shapes (scaled down).

    Also precomputes the fused kernel weight [Wq | Wk | Wv@Wlm] in bf16 once.
    """
    ks = jax.random.split(key, 7)
    p = {}
    p["tok_table"] = jax.random.normal(ks[0], (VOCAB_SIZE, N_EMBD), jnp.float32) * 0.02
    p["pos_table"] = jax.random.normal(ks[1], (BLOCK_SIZE, N_EMBD), jnp.float32) * 0.02
    lin = 1.0 / jnp.sqrt(jnp.float32(N_EMBD))
    # stored as (in, out), i.e. already transposed relative to PyTorch's (out, in)
    p["wk"]  = jax.random.uniform(ks[2], (N_EMBD, HEAD_SIZE), jnp.float32, -lin, lin)
    p["wq"]  = jax.random.uniform(ks[3], (N_EMBD, HEAD_SIZE), jnp.float32, -lin, lin)
    p["wv"]  = jax.random.uniform(ks[4], (N_EMBD, HEAD_SIZE), jnp.float32, -lin, lin)
    p["wlm"] = jax.random.uniform(ks[5], (HEAD_SIZE, VOCAB_SIZE), jnp.float32, -lin, lin)
    p["blm"] = jax.random.uniform(ks[6], (1, VOCAB_SIZE), jnp.float32, -lin, lin)

    # one-time kernel-weight prep: fold value proj into lm_head, cast to bf16
    w_vlm = p["wv"] @ p["wlm"]                                        # (C, V) f32
    p["w_fused"] = jnp.concatenate([p["wq"], p["wk"], w_vlm],
                                   axis=1).astype(jnp.bfloat16)       # (C, 2H+V)
    return p


@jax.jit
def _forward_impl(idx, tok_table, pos_table, w_fused, blm):
    b, t = idx.shape
    bt = b * t

    # pre-tiled positional slab (B*T, C) -- one broadcast op under jit
    pos_slab = jnp.tile(pos_table[:t], (b, 1))

    # combined causal + same-batch additive bias; built host-side at trace time,
    # so it is a compile-time constant under jit.
    row = np.arange(bt)[:, None]
    col = np.arange(bt)[None, :]
    keep = (row // t == col // t) & (row >= col)
    bias = np.where(keep, 0.0, -1e30).astype(np.float32)             # (B*T, B*T)

    logits2d = pl.pallas_call(
        _biagram_kernel,
        out_shape=jax.ShapeDtypeStruct((bt, VOCAB_SIZE), jnp.float32),
        in_specs=[
            pl.BlockSpec(memory_space=pltpu.MemorySpace.SMEM),   # idx (flat int32)
            pl.BlockSpec(memory_space=pltpu.MemorySpace.VMEM),   # token table (f32)
            pl.BlockSpec(memory_space=pltpu.MemorySpace.VMEM),   # pos slab (f32)
            pl.BlockSpec(memory_space=pltpu.MemorySpace.VMEM),   # mask bias (f32)
            pl.BlockSpec(memory_space=pltpu.MemorySpace.VMEM),   # fused weight (bf16)
            pl.BlockSpec(memory_space=pltpu.MemorySpace.VMEM),   # lm_head bias (f32)
        ],
        out_specs=pl.BlockSpec(memory_space=pltpu.MemorySpace.VMEM),
        scratch_shapes=[pltpu.VMEM((bt, N_EMBD), jnp.float32)],  # gathered tok rows
        # TODO(synk): at production sizes (n_embd=384, block_size=256, large B),
        # replace the flattened (B*T,B*T) attention with flash-style KV tiling
        # (m/l/acc scratch, KV grid axis "arbitrary", batch/q axis "parallel"
        # for v7x's 2 TCs) and re-derive tile sizes for 64 MiB VMEM.
    )(idx.reshape(bt).astype(jnp.int32), tok_table, pos_slab, bias, w_fused, blm)

    return logits2d.reshape(b, t, VOCAB_SIZE)    # free metadata reshape in XLA


def biagram_forward(idx, params, targets=None):
    """Equivalent of BiagramLanguageModel.forward(idx, targets=None)."""
    logits = _forward_impl(idx, params["tok_table"], params["pos_table"],
                           params["w_fused"], params["blm"])
    loss = None
    # TODO(synk): cross_entropy for `targets is not None` is plain-JAX glue
    # outside the Pallas hot path (not exercised in this example).
    return logits, loss


def _reference_forward(idx, params):
    """Pure-JAX f32 reference for correctness check (unfused weights)."""
    b, t = idx.shape
    tok = params["tok_table"][idx]                    # (B, T, C)
    x = tok + params["pos_table"][:t][None]
    k = x @ params["wk"]
    q = x @ params["wq"]
    v = x @ params["wv"]
    wei = jnp.einsum("bth,bsh->bts", q, k)            # no 1/sqrt(H) scale (matches src)
    mask = jnp.tril(jnp.ones((t, t), bool))
    wei = jnp.where(mask[None], wei, -jnp.inf)
    wei = jax.nn.softmax(wei, axis=-1)
    out = jnp.einsum("bts,bsh->bth", wei, v)
    return out @ params["wlm"] + params["blm"][0]


if __name__ == "__main__":
    key = jax.random.PRNGKey(0)
    pkey, ikey = jax.random.split(key)
    params = init_params(pkey)
    idx = jax.random.randint(ikey, (B, T), 0, VOCAB_SIZE, dtype=jnp.int32)

    logits, loss = biagram_forward(idx, params)
    logits = jax.block_until_ready(logits)

    ref = _reference_forward(idx, params)
    assert logits.shape == (B, T, VOCAB_SIZE)
    # bf16 MXU inputs, the (Wv@Wlm) fusion's rounding order, and the approx
    # reciprocal introduce ~1e-4..1e-3-scale deviation vs. the f32 reference.
    assert jnp.allclose(logits, ref, rtol=2e-3, atol=2e-3), "mismatch vs reference"
    print("KERNEL_OK")
</pallas_src>

<mosaic_0001>
module attributes {stable_mosaic.version = 11 : i64} {
  func.func @_biagram_kernel(%arg0: memref<16xi32, #tpu.memory_space<smem>>, %arg1: memref<128x128xf32, #tpu.memory_space<vmem>>, %arg2: memref<16x128xf32, #tpu.memory_space<vmem>>, %arg3: memref<16x16xf32, #tpu.memory_space<vmem>>, %arg4: memref<128x384xbf16, #tpu.memory_space<vmem>>, %arg5: memref<1x128xf32, #tpu.memory_space<vmem>>, %arg6: memref<16x128xf32, #tpu.memory_space<vmem>>, %arg7: memref<16x128xf32, #tpu.memory_space<vmem>>) attributes {dimension_semantics = [], scalar_prefetch = 0 : i64, scratch_operands = 1 : i64, tpu.core_type = #tpu.core_type<tc>} {
    %c0 = arith.constant 0 : index
    %0 = memref.load %arg0[%c0] : memref<16xi32, #tpu.memory_space<smem>>
    %1 = arith.index_cast %0 : i32 to index
    %c0_0 = arith.constant 0 : index
    %2 = vector.load %arg1[%1, %c0_0] : memref<128x128xf32, #tpu.memory_space<vmem>>, vector<1x128xf32>
    %c0_1 = arith.constant 0 : index
    %c0_2 = arith.constant 0 : index
    %3 = vector.load %arg7[%c0_1, %c0_2] : memref<16x128xf32, #tpu.memory_space<vmem>>, vector<1x128xf32>
    tpu.vector_store %arg7[%c0_1, %c0_2], %2 {strides = array<i32>} : memref<16x128xf32, #tpu.memory_space<vmem>>, vector<1x128xf32>,
    %c1 = arith.constant 1 : index
    %4 = memref.load %arg0[%c1] : memref<16xi32, #tpu.memory_space<smem>>
    %5 = arith.index_cast %4 : i32 to index
    %c0_3 = arith.constant 0 : index
    %6 = vector.load %arg1[%5, %c0_3] : memref<128x128xf32, #tpu.memory_space<vmem>>, vector<1x128xf32>
    %c1_4 = arith.constant 1 : index
    %c0_5 = arith.constant 0 : index
    %7 = vector.load %arg7[%c1_4, %c0_5] : memref<16x128xf32, #tpu.memory_space<vmem>>, vector<1x128xf32>
    tpu.vector_store %arg7[%c1_4, %c0_5], %6 {strides = array<i32>} : memref<16x128xf32, #tpu.memory_space<vmem>>, vector<1x128xf32>,
    %c2 = arith.constant 2 : index
    %8 = memref.load %arg0[%c2] : memref<16xi32, #tpu.memory_space<smem>>
    %9 = arith.index_cast %8 : i32 to index
    %c0_6 = arith.constant 0 : index
    %10 = vector.load %arg1[%9, %c0_6] : memref<128x128xf32, #tpu.memory_space<vmem>>, vector<1x128xf32>
    %c2_7 = arith.constant 2 : index
    %c0_8 = arith.constant 0 : index
    %11 = vector.load %arg7[%c2_7, %c0_8] : memref<16x128xf32, #tpu.memory_space<vmem>>, vector<1x128xf32>
    tpu.vector_store %arg7[%c2_7, %c0_8], %10 {strides = array<i32>} : memref<16x128xf32, #tpu.memory_space<vmem>>, vector<1x128xf32>,
    %c3 = arith.constant 3 : index
    %12 = memref.load %arg0[%c3] : memref<16xi32, #tpu.memory_space<smem>>
    %13 = arith.index_cast %12 : i32 to index
    %c0_9 = arith.constant 0 : index
    %14 = vector.load %arg1[%13, %c0_9] : memref<128x128xf32, #tpu.memory_space<vmem>>, vector<1x128xf32>
    %c3_10 = arith.constant 3 : index
    %c0_11 = arith.constant 0 : index
    %15 = vector.load %arg7[%c3_10, %c0_11] : memref<16x128xf32, #tpu.memory_space<vmem>>, vector<1x128xf32>
    tpu.vector_store %arg7[%c3_10, %c0_11], %14 {strides = array<i32>} : memref<16x128xf32, #tpu.memory_space<vmem>>, vector<1x128xf32>,
    %c4 = arith.constant 4 : index
    %16 = memref.load %arg0[%c4] : memref<16xi32, #tpu.memory_space<smem>>
    %17 = arith.index_cast %16 : i32 to index
    %c0_12 = arith.constant 0 : index
    %18 = vector.load %arg1[%17, %c0_12] : memref<128x128xf32, #tpu.memory_space<vmem>>, vector<1x128xf32>
    %c4_13 = arith.constant 4 : index
    %c0_14 = arith.constant 0 : index
    %19 = vector.load %arg7[%c4_13, %c0_14] : memref<16x128xf32, #tpu.memory_space<vmem>>, vector<1x128xf32>
    tpu.vector_store %arg7[%c4_13, %c0_14], %18 {strides = array<i32>} : memref<16x128xf32, #tpu.memory_space<vmem>>, vector<1x128xf32>,
    %c5 = arith.constant 5 : index
    %20 = memref.load %arg0[%c5] : memref<16xi32, #tpu.memory_space<smem>>
    %21 = arith.index_cast %20 : i32 to index
    %c0_15 = arith.constant 0 : index
    %22 = vector.load %arg1[%21, %c0_15] : memref<128x128xf32, #tpu.memory_space<vmem>>, vector<1x128xf32>
    %c5_16 = arith.constant 5 : index
    %c0_17 = arith.constant 0 : index
    %23 = vector.load %arg7[%c5_16, %c0_17] : memref<16x128xf32, #tpu.memory_space<vmem>>, vector<1x128xf32>
    tpu.vector_store %arg7[%c5_16, %c0_17], %22 {strides = array<i32>} : memref<16x128xf32, #tpu.memory_space<vmem>>, vector<1x128xf32>,
    %c6 = arith.constant 6 : index
    %24 = memref.load %arg0[%c6] : memref<16xi32, #tpu.memory_space<smem>>
    %25 = arith.index_cast %24 : i32 to index
    %c0_18 = arith.constant 0 : index
    %26 = vector.load %arg1[%25, %c0_18] : memref<128x128xf32, #tpu.memory_space<vmem>>, vector<1x128xf32>
    %c6_19 = arith.constant 6 : index
    %c0_20 = arith.constant 0 : index
    %27 = vector.load %arg7[%c6_19, %c0_20] : memref<16x128xf32, #tpu.memory_space<vmem>>, vector<1x128xf32>
    tpu.vector_store %arg7[%c6_19, %c0_20], %26 {strides = array<i32>} : memref<16x128xf32, #tpu.memory_space<vmem>>, vector<1x128xf32>,
    %c7 = arith.constant 7 : index
    %28 = memref.load %arg0[%c7] : memref<16xi32, #tpu.memory_space<smem>>
    %29 = arith.index_cast %28 : i32 to index
    %c0_21 = arith.constant 0 : index
    %30 = vector.load %arg1[%29, %c0_21] : memref<128x128xf32, #tpu.memory_space<vmem>>, vector<1x128xf32>
    %c7_22 = arith.constant 7 : index
    %c0_23 = arith.constant 0 : index
    %31 = vector.load %arg7[%c7_22, %c0_23] : memref<16x128xf32, #tpu.memory_space<vmem>>, vector<1x128xf32>
    tpu.vector_store %arg7[%c7_22, %c0_23], %30 {strides = array<i32>} : memref<16x128xf32, #tpu.memory_space<vmem>>, vector<1x128xf32>,
    %c8 = arith.constant 8 : index
    %32 = memref.load %arg0[%c8] : memref<16xi32, #tpu.memory_space<smem>>
    %33 = arith.index_cast %32 : i32 to index
    %c0_24 = arith.constant 0 : index
    %34 = vector.load %arg1[%33, %c0_24] : memref<128x128xf32, #tpu.memory_space<vmem>>, vector<1x128xf32>
    %c8_25 = arith.constant 8 : index
    %c0_26 = arith.constant 0 : index
    %35 = vector.load %arg7[%c8_25, %c0_26] : memref<16x128xf32, #tpu.memory_space<vmem>>, vector<1x128xf32>
    tpu.vector_store %arg7[%c8_25, %c0_26], %34 {strides = array<i32>} : memref<16x128xf32, #tpu.memory_space<vmem>>, vector<1x128xf32>,
    %c9 = arith.constant 9 : index
    %36 = memref.load %arg0[%c9] : memref<16xi32, #tpu.memory_space<smem>>
    %37 = arith.index_cast %36 : i32 to index
    %c0_27 = arith.constant 0 : index
    %38 = vector.load %arg1[%37, %c0_27] : memref<128x128xf32, #tpu.memory_space<vmem>>, vector<1x128xf32>
    %c9_28 = arith.constant 9 : index
    %c0_29 = arith.constant 0 : index
    %39 = vector.load %arg7[%c9_28, %c0_29] : memref<16x128xf32, #tpu.memory_space<vmem>>, vector<1x128xf32>
    tpu.vector_store %arg7[%c9_28, %c0_29], %38 {strides = array<i32>} : memref<16x128xf32, #tpu.memory_space<vmem>>, vector<1x128xf32>,
    %c10 = arith.constant 10 : index
    %40 = memref.load %arg0[%c10] : memref<16xi32, #tpu.memory_space<smem>>
    %41 = arith.index_cast %40 : i32 to index
    %c0_30 = arith.constant 0 : index
    %42 = vector.load %arg1[%41, %c0_30] : memref<128x128xf32, #tpu.memory_space<vmem>>, vector<1x128xf32>
    %c10_31 = arith.constant 10 : index
    %c0_32 = arith.constant 0 : index
    %43 = vector.load %arg7[%c10_31, %c0_32] : memref<16x128xf32, #tpu.memory_space<vmem>>, vector<1x128xf32>
    tpu.vector_store %arg7[%c10_31, %c0_32], %42 {strides = array<i32>} : memref<16x128xf32, #tpu.memory_space<vmem>>, vector<1x128xf32>,
    %c11 = arith.constant 11 : index
    %44 = memref.load %arg0[%c11] : memref<16xi32, #tpu.memory_space<smem>>
    %45 = arith.index_cast %44 : i32 to index
    %c0_33 = arith.constant 0 : index
    %46 = vector.load %arg1[%45, %c0_33] : memref<128x128xf32, #tpu.memory_space<vmem>>, vector<1x128xf32>
    %c11_34 = arith.constant 11 : index
    %c0_35 = arith.constant 0 : index
    %47 = vector.load %arg7[%c11_34, %c0_35] : memref<16x128xf32, #tpu.memory_space<vmem>>, vector<1x128xf32>
    tpu.vector_store %arg7[%c11_34, %c0_35], %46 {strides = array<i32>} : memref<16x128xf32, #tpu.memory_space<vmem>>, vector<1x128xf32>,
    %c12 = arith.constant 12 : index
    %48 = memref.load %arg0[%c12] : memref<16xi32, #tpu.memory_space<smem>>
    %49 = arith.index_cast %48 : i32 to index
    %c0_36 = arith.constant 0 : index
    %50 = vector.load %arg1[%49, %c0_36] : memref<128x128xf32, #tpu.memory_space<vmem>>, vector<1x128xf32>
    %c12_37 = arith.constant 12 : index
    %c0_38 = arith.constant 0 : index
    %51 = vector.load %arg7[%c12_37, %c0_38] : memref<16x128xf32, #tpu.memory_space<vmem>>, vector<1x128xf32>
    tpu.vector_store %arg7[%c12_37, %c0_38], %50 {strides = array<i32>} : memref<16x128xf32, #tpu.memory_space<vmem>>, vector<1x128xf32>,
    %c13 = arith.constant 13 : index
    %52 = memref.load %arg0[%c13] : memref<16xi32, #tpu.memory_space<smem>>
    %53 = arith.index_cast %52 : i32 to index
    %c0_39 = arith.constant 0 : index
    %54 = vector.load %arg1[%53, %c0_39] : memref<128x128xf32, #tpu.memory_space<vmem>>, vector<1x128xf32>
    %c13_40 = arith.constant 13 : index
    %c0_41 = arith.constant 0 : index
    %55 = vector.load %arg7[%c13_40, %c0_41] : memref<16x128xf32, #tpu.memory_space<vmem>>, vector<1x128xf32>
    tpu.vector_store %arg7[%c13_40, %c0_41], %54 {strides = array<i32>} : memref<16x128xf32, #tpu.memory_space<vmem>>, vector<1x128xf32>,
    %c14 = arith.constant 14 : index
    %56 = memref.load %arg0[%c14] : memref<16xi32, #tpu.memory_space<smem>>
    %57 = arith.index_cast %56 : i32 to index
    %c0_42 = arith.constant 0 : index
    %58 = vector.load %arg1[%57, %c0_42] : memref<128x128xf32, #tpu.memory_space<vmem>>, vector<1x128xf32>
    %c14_43 = arith.constant 14 : index
    %c0_44 = arith.constant 0 : index
    %59 = vector.load %arg7[%c14_43, %c0_44] : memref<16x128xf32, #tpu.memory_space<vmem>>, vector<1x128xf32>
    tpu.vector_store %arg7[%c14_43, %c0_44], %58 {strides = array<i32>} : memref<16x128xf32, #tpu.memory_space<vmem>>, vector<1x128xf32>,
    %c15 = arith.constant 15 : index
    %60 = memref.load %arg0[%c15] : memref<16xi32, #tpu.memory_space<smem>>
    %61 = arith.index_cast %60 : i32 to index
    %c0_45 = arith.constant 0 : index
    %62 = vector.load %arg1[%61, %c0_45] : memref<128x128xf32, #tpu.memory_space<vmem>>, vector<1x128xf32>
    %c15_46 = arith.constant 15 : index
    %c0_47 = arith.constant 0 : index
    %63 = vector.load %arg7[%c15_46, %c0_47] : memref<16x128xf32, #tpu.memory_space<vmem>>, vector<1x128xf32>
    tpu.vector_store %arg7[%c15_46, %c0_47], %62 {strides = array<i32>} : memref<16x128xf32, #tpu.memory_space<vmem>>, vector<1x128xf32>,
    %c0_48 = arith.constant 0 : index
    %c0_49 = arith.constant 0 : index
    %64 = vector.load %arg7[%c0_48, %c0_49] : memref<16x128xf32, #tpu.memory_space<vmem>>, vector<16x128xf32>
    %c0_50 = arith.constant 0 : index
    %c0_51 = arith.constant 0 : index
    %65 = vector.load %arg2[%c0_50, %c0_51] : memref<16x128xf32, #tpu.memory_space<vmem>>, vector<16x128xf32>
    %66 = arith.addf %64, %65 : vector<16x128xf32>
    %67 = arith.truncf %66 : vector<16x128xf32> to vector<16x128xbf16>
    %c0_52 = arith.constant 0 : index
    %c0_53 = arith.constant 0 : index
    %68 = vector.load %arg4[%c0_52, %c0_53] : memref<128x384xbf16, #tpu.memory_space<vmem>>, vector<128x384xbf16>
    %cst = arith.constant dense<0.000000e+00> : vector<16x384xf32>
    %69 = tpu.matmul %67, %68, %cst {dimension_numbers = #tpu.dot_dimension_numbers<[1], [0], [0], [1], [0, 0, 1, 1], [], []>} : vector<16x128xbf16>, vector<128x384xbf16>, vector<16x384xf32> -> vector<16x384xf32>
    %70 = vector.extract_strided_slice %69 {offsets = [0, 0], sizes = [16, 128], strides = [1, 1]} : vector<16x384xf32> to vector<16x128xf32>
    %71 = vector.extract_strided_slice %69 {offsets = [0, 128], sizes = [16, 128], strides = [1, 1]} : vector<16x384xf32> to vector<16x128xf32>
    %72 = vector.extract_strided_slice %69 {offsets = [0, 256], sizes = [16, 128], strides = [1, 1]} : vector<16x384xf32> to vector<16x128xf32>
    %73 = arith.truncf %70 : vector<16x128xf32> to vector<16x128xbf16>
    %74 = arith.truncf %71 : vector<16x128xf32> to vector<16x128xbf16>
    %cst_54 = arith.constant dense<0.000000e+00> : vector<16x16xf32>
    %75 = tpu.matmul %73, %74, %cst_54 {dimension_numbers = #tpu.dot_dimension_numbers<[1], [1], [0], [0], [0, 0, 1, 0], [], []>} : vector<16x128xbf16>, vector<16x128xbf16>, vector<16x16xf32> -> vector<16x16xf32>
    %c0_55 = arith.constant 0 : index
    %c0_56 = arith.constant 0 : index
    %76 = vector.load %arg3[%c0_55, %c0_56] : memref<16x16xf32, #tpu.memory_space<vmem>>, vector<16x16xf32>
    %77 = arith.addf %75, %76 : vector<16x16xf32>
    %cst_57 = arith.constant dense<0xFF800000> : vector<16xf32>
    %78 = vector.multi_reduction <maximumf>, %77, %cst_57 [1] : vector<16x16xf32> to vector<16xf32>
    %79 = vector.shape_cast %78 : vector<16xf32> to vector<16x1xf32>
    %80 = vector.broadcast %79 : vector<16x1xf32> to vector<16x16xf32>
    %81 = arith.subf %77, %80 : vector<16x16xf32>
    %82 = math.exp %81 : vector<16x16xf32>
    %cst_58 = arith.constant dense<0.000000e+00> : vector<16xf32>
    %83 = vector.multi_reduction <add>, %82, %cst_58 [1] : vector<16x16xf32> to vector<16xf32>
    %84 = vector.shape_cast %83 : vector<16xf32> to vector<16x1xf32>
    %85 = tpu.reciprocal %84 {approx = true} : vector<16x1xf32> -> vector<16x1xf32>
    %86 = vector.broadcast %85 : vector<16x1xf32> to vector<16x16xf32>
    %87 = arith.mulf %82, %86 : vector<16x16xf32>
    %88 = arith.truncf %87 : vector<16x16xf32> to vector<16x16xbf16>
    %89 = arith.truncf %72 : vector<16x128xf32> to vector<16x128xbf16>
    %cst_59 = arith.constant dense<0.000000e+00> : vector<16x128xf32>
    %90 = tpu.matmul %88, %89, %cst_59 {dimension_numbers = #tpu.dot_dimension_numbers<[1], [0], [0], [1], [0, 0, 1, 1], [], []>} : vector<16x16xbf16>, vector<16x128xbf16>, vector<16x128xf32> -> vector<16x128xf32>
    %c0_60 = arith.constant 0 : index
    %c0_61 = arith.constant 0 : index
    %91 = vector.load %arg5[%c0_60, %c0_61] : memref<1x128xf32, #tpu.memory_space<vmem>>, vector<1x128xf32>
    %92 = vector.broadcast %91 : vector<1x128xf32> to vector<16x128xf32>
    %93 = arith.addf %90, %92 : vector<16x128xf32>
    %c0_62 = arith.constant 0 : index
    %c0_63 = arith.constant 0 : index
    %94 = vector.load %arg6[%c0_62, %c0_63] : memref<16x128xf32, #tpu.memory_space<vmem>>, vector<16x128xf32>
    tpu.vector_store %arg6[%c0_62, %c0_63], %93 {strides = array<i32>} : memref<16x128xf32, #tpu.memory_space<vmem>>, vector<16x128xf32>,
    return
  }
}

</mosaic_0001>

<llo_original>
// kernel: _forward_impl.1
$region0: #{_forward_impl.1}
  #allocation0 [shape = 'u32[]', space=smem, size = 0x4, offset = 0x4, fixed_abs, tag = 'smem constant byte address 0x4 - core index']
  #allocation1 [shape = 'u32[144,128]{1,0:T(1,128)}', space=vmem, size = 0x12000, scoped, tag = 'internal scratch']
  #allocation2 [shape = 'f32[16,128]{1,0:T(8,128)}', space=vmem, size = 0x2000, scoped, tag = 'scratch operand']
  %s0 = inlined_call_operand.vmem [shape: s32[16], index: 0, kind: input, shape index: {}]
  %s1 = inlined_call_operand.hbm [shape: f32[128,128], index: 1, kind: input, shape index: {}]
  %s2 = inlined_call_operand.vmem [shape: f32[16,128], index: 2, kind: input, shape index: {}]
  %s3 = inlined_call_operand.vmem [shape: f32[16,16], index: 3, kind: input, shape index: {}]
  %s4 = inlined_call_operand.hbm [shape: bf16[128,384], index: 4, kind: input, shape index: {}]
  %s5 = inlined_call_operand.vmem [shape: f32[1,128], index: 5, kind: input, shape index: {}]
  %s6 = inlined_call_operand.hbm [shape: f32[16,128], index: 6, kind: output, shape index: {}]
  %s7 = sld [smem:[#allocation0]]
  $region46: #{_forward_impl.1} parent=0
    _
  %s9 = ssub.s32 1, %s7
  %s10 = scalar_select 0, %s9, %s7
  $region1: #{_forward_impl.1} parent=0
    #allocation3 [shape = 'u8[512]{0}', space=smem, size = 0x200, scoped, tag = 'input window, operand 0, single buffered']
    #allocation4 [shape = 's32[1]{0}', space=sflag, size = 0x4, scoped, tag = 'scoped memory for _forward_impl.1']
    #allocation5 [shape = 's32[1]{0}', space=sflag, size = 0x4, scoped, tag = 'scoped memory for _forward_impl.1']
    #allocation6 [shape = 's32[1]{0}', space=sflag, size = 0x4, scoped, tag = 'scoped memory for _forward_impl.1']
    #allocation7 [shape = 'u8[65536]{0}', space=vmem, size = 0x10000, scoped, tag = 'input window, operand 1, single buffered']
    #allocation8 [shape = 'u8[98304]{0}', space=vmem, size = 0x18000, scoped, tag = 'input window, operand 4, single buffered']
    #allocation9 [shape = 's32[1]{0}', space=sflag, size = 0x4, scoped, tag = 'scoped memory for _forward_impl.1']
    #allocation10 [shape = 'u8[8192]{0}', space=vmem, size = 0x2000, scoped, tag = 'output window, operand 0, single buffered']
    %11 = vsyncpa [#allocation6], 0
    %12 = vsyncpa [#allocation4], 0
    %13 = vsyncpa [#allocation9], 0
    %14 = vsyncpa [#allocation5], 0
    // Predicated region
    $region2: #{_forward_impl.1} parent=1 // pred_check
      _
    $region3: #{_forward_impl.1} parent=1 // pred_check_branch
      %16 = sbr.rel (0) target = $region5
    $region4: #{_forward_impl.1} parent=1 // pred_region
      %s18 = ssub.s32 16, 16
      %19 = vsyncadd [#allocation6], %s18
      %s21 = sshll.u32 %s0, 4
      %s22 = int_to_ptr.vmem [resolvable:$true] %s21
      %24 = dma.vmem_to_smem %s22, 16, [#allocation3], [#allocation6]
    $region5: #{_forward_impl.1} parent=1 // pred_fallthru
      _
    // Predicated region
    $region6: #{_forward_impl.1} parent=1 // pred_check
      _
    $region7: #{_forward_impl.1} parent=1 // pred_check_branch
      %26 = sbr.rel (0) target = $region9
    $region8: #{_forward_impl.1} parent=1 // pred_region
      %s28 = ssub.s32 2048, 2048
      %29 = vsyncadd [#allocation4], %s28
      %s30 = sshll.u32 [#allocation7], 4
      %s31 = int_to_ptr.vmem [resolvable:$true] %s30
      %36 = dma.hbm_to_vmem [thread:$0]  %s1, 2048, %s31, [#allocation4], 128, 128, 8
    $region9: #{_forward_impl.1} parent=1 // pred_fallthru
      _
    // Predicated region
    $region10: #{_forward_impl.1} parent=1 // pred_check
      _
    $region11: #{_forward_impl.1} parent=1 // pred_check_branch
      %38 = sbr.rel (0) target = $region13
    $region12: #{_forward_impl.1} parent=1 // pred_region
      _
    $region13: #{_forward_impl.1} parent=1 // pred_fallthru
      _
    // Predicated region
    $region14: #{_forward_impl.1} parent=1 // pred_check
      _
    $region15: #{_forward_impl.1} parent=1 // pred_check_branch
      %40 = sbr.rel (0) target = $region17
    $region16: #{_forward_impl.1} parent=1 // pred_region
      _
    $region17: #{_forward_impl.1} parent=1 // pred_fallthru
      _
    // Predicated region
    $region18: #{_forward_impl.1} parent=1 // pred_check
      _
    $region19: #{_forward_impl.1} parent=1 // pred_check_branch
      %42 = sbr.rel (0) target = $region21
    $region20: #{_forward_impl.1} parent=1 // pred_region
      %s44 = ssub.s32 3072, 3072
      %45 = vsyncadd [#allocation9], %s44
      %s46 = sshll.u32 [#allocation8], 4
      %s47 = int_to_ptr.vmem [resolvable:$true] %s46
      %52 = dma.hbm_to_vmem [thread:$0]  %s4, 3072, %s47, [#allocation9], 192, 192, 12
    $region21: #{_forward_impl.1} parent=1 // pred_fallthru
      _
    // Predicated region
    $region22: #{_forward_impl.1} parent=1 // pred_check
      _
    $region23: #{_forward_impl.1} parent=1 // pred_check_branch
      %54 = sbr.rel (0) target = $region25
    $region24: #{_forward_impl.1} parent=1 // pred_region
      _
    $region25: #{_forward_impl.1} parent=1 // pred_fallthru
      _
    // Predicated region
    $region26: #{_forward_impl.1} parent=1 // pred_check
      _
    $region27: #{_forward_impl.1} parent=1 // pred_check_branch
      %56 = sbr.rel (0) target = $region29
    $region28: #{_forward_impl.1} parent=1 // pred_region
      %57 = dma.done [#allocation6], 16
    $region29: #{_forward_impl.1} parent=1 // pred_fallthru
      _
    // Predicated region
    $region30: #{_forward_impl.1} parent=1 // pred_check
      _
    $region31: #{_forward_impl.1} parent=1 // pred_check_branch
      %59 = sbr.rel (0) target = $region33
    $region32: #{_forward_impl.1} parent=1 // pred_region
      %60 = dma.done [#allocation4], 2048
    $region33: #{_forward_impl.1} parent=1 // pred_fallthru
      _
    // Predicated region
    $region34: #{_forward_impl.1} parent=1 // pred_check
      _
    $region35: #{_forward_impl.1} parent=1 // pred_check_branch
      %62 = sbr.rel (0) target = $region37
    $region36: #{_forward_impl.1} parent=1 // pred_region
      %63 = dma.done [#allocation9], 3072
    $region37: #{_forward_impl.1} parent=1 // pred_fallthru
      _
    %64 = sfence
    %s66 = sld [smem:[#allocation3]]
    %s67 = scalar_lea.vmem [#allocation7], %s66
    %v68 = vld [vmem:[%s67] sm:$0x1]
    %69 = vst [vmem:[#allocation2] sm:$0x1] %v68
    %s70 = sld [smem:[#allocation3 + $0x1]]
    %s71 = scalar_lea.vmem [#allocation7], %s70
    %v72 = vld [vmem:[%s71] sm:$0x1]
    %73 = vst [vmem:[#allocation2 + $0x1] sm:$0x1] %v72
    %s74 = sld [smem:[#allocation3 + $0x2]]
    %s75 = scalar_lea.vmem [#allocation7], %s74
    %v76 = vld [vmem:[%s75] sm:$0x1]
    %77 = vst [vmem:[#allocation2 + $0x2] sm:$0x1] %v76
    %s78 = sld [smem:[#allocation3 + $0x3]]
    %s79 = scalar_lea.vmem [#allocation7], %s78
    %v80 = vld [vmem:[%s79] sm:$0x1]
    %81 = vst [vmem:[#allocation2 + $0x3] sm:$0x1] %v80
    %s82 = sld [smem:[#allocation3 + $0x4]]
    %s83 = scalar_lea.vmem [#allocation7], %s82
    %v84 = vld [vmem:[%s83] sm:$0x1]
    %85 = vst [vmem:[#allocation2 + $0x4] sm:$0x1] %v84
    %s86 = sld [smem:[#allocation3 + $0x5]]
    %s87 = scalar_lea.vmem [#allocation7], %s86
    %v88 = vld [vmem:[%s87] sm:$0x1]
    %89 = vst [vmem:[#allocation2 + $0x5] sm:$0x1] %v88
    %s90 = sld [smem:[#allocation3 + $0x6]]
    %s91 = scalar_lea.vmem [#allocation7], %s90
    %v92 = vld [vmem:[%s91] sm:$0x1]
    %93 = vst [vmem:[#allocation2 + $0x6] sm:$0x1] %v92
    %s94 = sld [smem:[#allocation3 + $0x7]]
    %s95 = scalar_lea.vmem [#allocation7], %s94
    %v96 = vld [vmem:[%s95] sm:$0x1]
    %97 = vst [vmem:[#allocation2 + $0x7] sm:$0x1] %v96
    %s98 = sld [smem:[#allocation3 + $0x8]]
    %s99 = scalar_lea.vmem [#allocation7], %s98
    %v100 = vld [vmem:[%s99] sm:$0x1]
    %101 = vst [vmem:[#allocation2 + $0x8] sm:$0x1] %v100
    %s102 = sld [smem:[#allocation3 + $0x9]]
    %s103 = scalar_lea.vmem [#allocation7], %s102
    %v104 = vld [vmem:[%s103] sm:$0x1]
    %105 = vst [vmem:[#allocation2 + $0x9] sm:$0x1] %v104
    %s106 = sld [smem:[#allocation3 + $0xa]]
    %s107 = scalar_lea.vmem [#allocation7], %s106
    %v108 = vld [vmem:[%s107] sm:$0x1]
    %109 = vst [vmem:[#allocation2 + $0xa] sm:$0x1] %v108
    %s110 = sld [smem:[#allocation3 + $0xb]]
    %s111 = scalar_lea.vmem [#allocation7], %s110
    %v112 = vld [vmem:[%s111] sm:$0x1]
    %113 = vst [vmem:[#allocation2 + $0xb] sm:$0x1] %v112
    %s114 = sld [smem:[#allocation3 + $0xc]]
    %s115 = scalar_lea.vmem [#allocation7], %s114
    %v116 = vld [vmem:[%s115] sm:$0x1]
    %117 = vst [vmem:[#allocation2 + $0xc] sm:$0x1] %v116
    %s118 = sld [smem:[#allocation3 + $0xd]]
    %s119 = scalar_lea.vmem [#allocation7], %s118
    %v120 = vld [vmem:[%s119] sm:$0x1]
    %121 = vst [vmem:[#allocation2 + $0xd] sm:$0x1] %v120
    %s122 = sld [smem:[#allocation3 + $0xe]]
    %s123 = scalar_lea.vmem [#allocation7], %s122
    %v124 = vld [vmem:[%s123] sm:$0x1]
    %125 = vst [vmem:[#allocation2 + $0xe] sm:$0x1] %v124
    %s126 = sld [smem:[#allocation3 + $0xf]]
    %s127 = scalar_lea.vmem [#allocation7], %s126
    %v128 = vld [vmem:[%s127] sm:$0x1]
    %129 = vst [vmem:[#allocation2 + $0xf] sm:$0x1] %v128
    %v130 = vld [vmem:[#allocation2] sm:$0xff]
    %v131 = vld [vmem:[#allocation2 + $0x8] sm:$0xff]
    %v132 = vld [vmem:[%s2] sm:$0xff]
    %v133 = vld [vmem:[%s2 + $0x8] sm:$0xff]
    %v134 = vadd.f32 %v130, %v132
    %v135 = vadd.f32 %v131, %v133
    %v136 = vpack.c.bf16 %v135, %v134
    %v137 = vld [vmem:[#allocation8] sm:$0xff]
    %v138 = vld [vmem:[#allocation8 + $0x8] sm:$0xf]
    %v139 = vld [vmem:[#allocation8 + $0xc] sm:$0xff]
    %v140 = vld [vmem:[#allocation8 + $0x14] sm:$0xf]
    %v141 = vld [vmem:[#allocation8 + $0x18] sm:$0xff]
    %v142 = vld [vmem:[#allocation8 + $0x20] sm:$0xf]
    %v143 = vld [vmem:[#allocation8 + $0x24] sm:$0xff]
    %v144 = vld [vmem:[#allocation8 + $0x2c] sm:$0xf]
    %v145 = vld [vmem:[#allocation8 + $0x30] sm:$0xff]
    %v146 = vld [vmem:[#allocation8 + $0x38] sm:$0xf]
    %v147 = vld [vmem:[#allocation8 + $0x3c] sm:$0xff]
    %v148 = vld [vmem:[#allocation8 + $0x44] sm:$0xf]
    %v149 = vld [vmem:[#allocation8 + $0x48] sm:$0xff]
    %v150 = vld [vmem:[#allocation8 + $0x50] sm:$0xf]
    %v151 = vld [vmem:[#allocation8 + $0x54] sm:$0xff]
    %v152 = vld [vmem:[#allocation8 + $0x5c] sm:$0xf]
    %v153 = vld [vmem:[#allocation8 + $0x60] sm:$0xff]
    %v154 = vld [vmem:[#allocation8 + $0x68] sm:$0xf]
    %v155 = vld [vmem:[#allocation8 + $0x6c] sm:$0xff]
    %v156 = vld [vmem:[#allocation8 + $0x74] sm:$0xf]
    %v157 = vld [vmem:[#allocation8 + $0x78] sm:$0xff]
    %v158 = vld [vmem:[#allocation8 + $0x80] sm:$0xf]
    %v159 = vld [vmem:[#allocation8 + $0x84] sm:$0xff]
    %v160 = vld [vmem:[#allocation8 + $0x8c] sm:$0xf]
    %v161 = vld [vmem:[#allocation8 + $0x90] sm:$0xff]
    %v162 = vld [vmem:[#allocation8 + $0x98] sm:$0xf]
    %v163 = vld [vmem:[#allocation8 + $0x9c] sm:$0xff]
    %v164 = vld [vmem:[#allocation8 + $0xa4] sm:$0xf]
    %v165 = vld [vmem:[#allocation8 + $0xa8] sm:$0xff]
    %v166 = vld [vmem:[#allocation8 + $0xb0] sm:$0xf]
    %v167 = vld [vmem:[#allocation8 + $0xb4] sm:$0xff]
    %v168 = vld [vmem:[#allocation8 + $0xbc] sm:$0xf]
    %v201 = vunpack.c.l.b16 %v137
    %v202 = vunpack.c.h.b16 %v137
    %v203 = vunpack.c.l.b16 %v138
    %v204 = vunpack.c.l.b16 %v139
    %v205 = vunpack.c.h.b16 %v139
    %v206 = vunpack.c.l.b16 %v140
    %v207 = vunpack.c.l.b16 %v141
    %v208 = vunpack.c.h.b16 %v141
    %v209 = vunpack.c.l.b16 %v142
    %v210 = vunpack.c.l.b16 %v143
    %v211 = vunpack.c.h.b16 %v143
    %v212 = vunpack.c.l.b16 %v144
    %v213 = vunpack.c.l.b16 %v145
    %v214 = vunpack.c.h.b16 %v145
    %v215 = vunpack.c.l.b16 %v146
    %v216 = vunpack.c.l.b16 %v147
    %v217 = vunpack.c.h.b16 %v147
    %v218 = vunpack.c.l.b16 %v148
    %v219 = vunpack.c.l.b16 %v149
    %v220 = vunpack.c.h.b16 %v149
    %v221 = vunpack.c.l.b16 %v150
    %v222 = vunpack.c.l.b16 %v151
    %v223 = vunpack.c.h.b16 %v151
    %v224 = vunpack.c.l.b16 %v152
    %v225 = vunpack.c.l.b16 %v153
    %v226 = vunpack.c.h.b16 %v153
    %v227 = vunpack.c.l.b16 %v154
    %v228 = vunpack.c.l.b16 %v155
    %v229 = vunpack.c.h.b16 %v155
    %v230 = vunpack.c.l.b16 %v156
    %v231 = vunpack.c.l.b16 %v157
    %v232 = vunpack.c.h.b16 %v157
    %v233 = vunpack.c.l.b16 %v158
    %v234 = vunpack.c.l.b16 %v159
    %v235 = vunpack.c.h.b16 %v159
    %v236 = vunpack.c.l.b16 %v160
    %v237 = vunpack.c.l.b16 %v161
    %v238 = vunpack.c.h.b16 %v161
    %v239 = vunpack.c.l.b16 %v162
    %v240 = vunpack.c.l.b16 %v163
    %v241 = vunpack.c.h.b16 %v163
    %v242 = vunpack.c.l.b16 %v164
    %v243 = vunpack.c.l.b16 %v165
    %v244 = vunpack.c.h.b16 %v165
    %v245 = vunpack.c.l.b16 %v166
    %v246 = vunpack.c.l.b16 %v167
    %v247 = vunpack.c.h.b16 %v167
    %v248 = vunpack.c.l.b16 %v168
    %v249 = vpack.c.b16 %v204, %v201
    %v250 = vpack.c.b16 %v205, %v202
    %v251 = vpack.c.b16 %v206, %v203
    %v252 = vpack.c.b16 %v210, %v207
    %v253 = vpack.c.b16 %v211, %v208
    %v254 = vpack.c.b16 %v212, %v209
    %v255 = vpack.c.b16 %v216, %v213
    %v256 = vpack.c.b16 %v217, %v214
    %v257 = vpack.c.b16 %v218, %v215
    %v258 = vpack.c.b16 %v222, %v219
    %v259 = vpack.c.b16 %v223, %v220
    %v260 = vpack.c.b16 %v224, %v221
    %v261 = vpack.c.b16 %v228, %v225
    %v262 = vpack.c.b16 %v229, %v226
    %v263 = vpack.c.b16 %v230, %v227
    %v264 = vpack.c.b16 %v234, %v231
    %v265 = vpack.c.b16 %v235, %v232
    %v266 = vpack.c.b16 %v236, %v233
    %v267 = vpack.c.b16 %v240, %v237
    %v268 = vpack.c.b16 %v241, %v238
    %v269 = vpack.c.b16 %v242, %v239
    %v270 = vpack.c.b16 %v246, %v243
    %v271 = vpack.c.b16 %v247, %v244
    %v272 = vpack.c.b16 %v248, %v245
    %297 = vmatprep.subr.bf16.mxu0 %v271
    %298 = vmatpush1.bf16.msra.mxu0 %v270
    %299 = vmatprep.subr.bf16.mxu0 %v268
    %300 = vmatpush1.bf16.msra.mxu0 %v267
    %301 = vmatprep.subr.bf16.mxu0 %v265
    %302 = vmatpush1.bf16.msra.mxu0 %v264
    %303 = vmatprep.subr.bf16.mxu0 %v262
    %304 = vmatpush1.bf16.msra.mxu0 %v261
    %305 = vmatprep.subr.bf16.mxu0 %v259
    %306 = vmatpush1.bf16.msra.mxu0 %v258
    %307 = vmatprep.subr.bf16.mxu0 %v256
    %308 = vmatpush1.bf16.msra.mxu0 %v255
    %309 = vmatprep.subr.bf16.mxu0 %v253
    %310 = vmatpush1.bf16.msra.mxu0 %v252
    %311 = vmatprep.subr.bf16.mxu0 %v250
    %312 = vmatpush1.bf16.msra.mxu0 %v249
    %313 = vmatprep.subr.bf16.mxu0 0
    %314 = vmatpush2.bf16.msra.mxu0 0
    %315 = vmatprep.subr.bf16.mxu0 0
    %316 = vmatpush2.bf16.msra.mxu0 0
    %317 = vmatprep.subr.bf16.mxu0 0
    %318 = vmatpush2.bf16.msra.mxu0 0
    %319 = vmatprep.subr.bf16.mxu0 0
    %320 = vmatpush2.bf16.msra.mxu0 0
    %321 = vmatprep.subr.bf16.mxu0 0
    %322 = vmatpush2.bf16.msra.mxu0 0
    %323 = vmatprep.subr.bf16.mxu0 0
    %324 = vmatpush2.bf16.msra.mxu0 0
    %325 = vmatprep.subr.bf16.mxu0 0
    %326 = vmatpush2.bf16.msra.mxu0 0
    %327 = vmatprep.subr.bf16.mxu0 0
    %328 = vmatpush2.bf16.msra.mxu0 0
    %329 = vmatprep.mubr.bf16.mxu0 0
    %330 = vmatmul.mubr.bf16.gmra.mxu0 %v136
    %v331 = vpop.f32.mrf.mxu0
    %v332 = vadd.f32 0.0, %v331
    %v333 = vpop.f32.mrf.mxu0
    %v334 = vadd.f32 0.0, %v333
    %v335 = vpop.f32.mrf.mxu0
    %v336 = vadd.f32 0.0, %v335
    %v337 = vpop.f32.mrf.mxu0
    %v338 = vadd.f32 0.0, %v337
    %339 = vdwg.mxu0
    %340 = vmatprep.subr.bf16.mxu0 0
    %341 = vmatpush1.bf16.msra.mxu0 %v272
    %342 = vmatprep.subr.bf16.mxu0 0
    %343 = vmatpush1.bf16.msra.mxu0 %v269
    %344 = vmatprep.subr.bf16.mxu0 0
    %345 = vmatpush1.bf16.msra.mxu0 %v266
    %346 = vmatprep.subr.bf16.mxu0 0
    %347 = vmatpush1.bf16.msra.mxu0 %v263
    %348 = vmatprep.subr.bf16.mxu0 0
    %349 = vmatpush1.bf16.msra.mxu0 %v260
    %350 = vmatprep.subr.bf16.mxu0 0
    %351 = vmatpush1.bf16.msra.mxu0 %v257
    %352 = vmatprep.subr.bf16.mxu0 0
    %353 = vmatpush1.bf16.msra.mxu0 %v254
    %354 = vmatprep.subr.bf16.mxu0 0
    %355 = vmatpush1.bf16.msra.mxu0 %v251
    %356 = vmatprep.subr.bf16.mxu0 0
    %357 = vmatpush2.bf16.msra.mxu0 0
    %358 = vmatprep.subr.bf16.mxu0 0
    %359 = vmatpush2.bf16.msra.mxu0 0
    %360 = vmatprep.subr.bf16.mxu0 0
    %361 = vmatpush2.bf16.msra.mxu0 0
    %362 = vmatprep.subr.bf16.mxu0 0
    %363 = vmatpush2.bf16.msra.mxu0 0
    %364 = vmatprep.subr.bf16.mxu0 0
    %365 = vmatpush2.bf16.msra.mxu0 0
    %366 = vmatprep.subr.bf16.mxu0 0
    %367 = vmatpush2.bf16.msra.mxu0 0
    %368 = vmatprep.subr.bf16.mxu0 0
    %369 = vmatpush2.bf16.msra.mxu0 0
    %370 = vmatprep.subr.bf16.mxu0 0
    %371 = vmatpush2.bf16.msra.mxu0 0
    %372 = vmatprep.mubr.bf16.mxu0 0
    %373 = vmatmul.mubr.bf16.gmra.mxu0 %v136
    %v374 = vpop.f32.mrf.mxu0
    %v375 = vadd.f32 0.0, %v374
    %v376 = vpop.f32.mrf.mxu0
    %v377 = vpop.f32.mrf.mxu0
    %v378 = vadd.f32 0.0, %v377
    %v379 = vpop.f32.mrf.mxu0
    %380 = vdwg.mxu0
    %v381 = vpack.c.bf16 %v336, %v332
    %v382 = vpack.c.bf16 %v338, %v334
    %v383 = vld [vmem:[%s3] sm:$0xff]
    %v384 = vld [vmem:[%s3 + $0x8] sm:$0xff]
    %385 = vmatprep.subr.bf16.mxu0 0
    %386 = vmatpush1.bf16.xpose.msra.mxu0 0
    %387 = vmatprep.subr.bf16.mxu0 0
    %388 = vmatpush1.bf16.xpose.msra.mxu0 0
    %389 = vmatprep.subr.bf16.mxu0 0
    %390 = vmatpush1.bf16.xpose.msra.mxu0 0
    %391 = vmatprep.subr.bf16.mxu0 0
    %392 = vmatpush1.bf16.xpose.msra.mxu0 0
    %393 = vmatprep.subr.bf16.mxu0 0
    %394 = vmatpush1.bf16.xpose.msra.mxu0 0
    %395 = vmatprep.subr.bf16.mxu0 0
    %396 = vmatpush1.bf16.xpose.msra.mxu0 0
    %397 = vmatprep.subr.bf16.mxu0 0
    %398 = vmatpush1.bf16.xpose.msra.mxu0 0
    %399 = vmatprep.subr.bf16.mxu0 0
    %400 = vmatpush1.bf16.xpose.msra.mxu0 %v382
    %401 = vmatprep.subr.bf16.mxu0 0
    %402 = vmatpush2.bf16.xpose.msra.mxu0 0
    %403 = vmatprep.subr.bf16.mxu0 0
    %404 = vmatpush2.bf16.xpose.msra.mxu0 0
    %405 = vmatprep.subr.bf16.mxu0 0
    %406 = vmatpush2.bf16.xpose.msra.mxu0 0
    %407 = vmatprep.subr.bf16.mxu0 0
    %408 = vmatpush2.bf16.xpose.msra.mxu0 0
    %409 = vmatprep.subr.bf16.mxu0 0
    %410 = vmatpush2.bf16.xpose.msra.mxu0 0
    %411 = vmatprep.subr.bf16.mxu0 0
    %412 = vmatpush2.bf16.xpose.msra.mxu0 0
    %413 = vmatprep.subr.bf16.mxu0 0
    %414 = vmatpush2.bf16.xpose.msra.mxu0 0
    %415 = vmatprep.subr.bf16.mxu0 0
    %416 = vmatpush2.bf16.xpose.msra.mxu0 0
    %417 = vmatprep.mubr.bf16.mxu0 0
    %418 = vmatmul.mubr.bf16.gmra.mxu0 %v381
    %v419 = vpop.f32.mrf.mxu0
    %v420 = vadd.f32 %v383, %v419
    %v421 = vpop.f32.mrf.mxu0
    %v422 = vpop.f32.mrf.mxu0
    %v423 = vadd.f32 %v384, %v422
    %v424 = vpop.f32.mrf.mxu0
    %425 = vdwg.mxu0
    %vm426 = vcmask 130048
    %v427 = vsel %vm426, %v420, -inf
    %428 = vmax.xlane.f32.xlu0 %v427
    %v429 = vpop.xlane.xlu0 %428
    %v430 = vsel %vm426, %v423, -inf
    %431 = vmax.xlane.f32.xlu0 %v430
    %v432 = vpop.xlane.xlu0 %431
    %v433 = vsub.f32 %v420, %v429
    %v434 = vsub.f32 %v423, %v432
    %v435 = vmul.f32 %v433, 1.442695
    %v436 = vpow.pop %v435
    %v437 = vmul.f32 %v434, 1.442695
    %v438 = vpow.pop %v437
    %v439 = vsel %vm426, %v436, 0.0
    %440 = vadd.xlane.f32.xlu0 %v439
    %v441 = vpop.xlane.xlu0 %440
    %v442 = vsel %vm426, %v438, 0.0
    %443 = vadd.xlane.f32.xlu0 %v442
    %v444 = vpop.xlane.xlu0 %443
    %v445 = vrcp.pop %v441
    %v446 = vrcp.pop %v444
    %v447 = vmul.f32 %v436, %v445
    %v448 = vmul.f32 %v438, %v446
    %v449 = vpack.c.bf16 %v448, %v447
    %v450 = vpack.c.bf16 %v378, %v375
    %v451 = vld [vmem:[%s5] sm:$0x1]
    %v453 = vlaneseq
    %v454 = vshrl.u32 %v453, 7
    %v455 = vsub.s32 0, %v454
    %v456 = vrot.slane %v451, %v455
    %v459 = vsel %vm426, %v449, 0
    %461 = vmatprep.subr.bf16.mxu0 0
    %462 = vmatpush1.bf16.msra.mxu0 0
    %463 = vmatprep.subr.bf16.mxu0 0
    %464 = vmatpush1.bf16.msra.mxu0 0
    %465 = vmatprep.subr.bf16.mxu0 0
    %466 = vmatpush1.bf16.msra.mxu0 0
    %467 = vmatprep.subr.bf16.mxu0 0
    %468 = vmatpush1.bf16.msra.mxu0 0
    %469 = vmatprep.subr.bf16.mxu0 0
    %470 = vmatpush1.bf16.msra.mxu0 0
    %471 = vmatprep.subr.bf16.mxu0 0
    %472 = vmatpush1.bf16.msra.mxu0 0
    %473 = vmatprep.subr.bf16.mxu0 0
    %474 = vmatpush1.bf16.msra.mxu0 0
    %475 = vmatprep.subr.bf16.mxu0 0
    %476 = vmatpush1.bf16.msra.mxu0 %v450
    %477 = vmatprep.subr.bf16.mxu0 0
    %478 = vmatpush2.bf16.msra.mxu0 0
    %479 = vmatprep.subr.bf16.mxu0 0
    %480 = vmatpush2.bf16.msra.mxu0 0
    %481 = vmatprep.subr.bf16.mxu0 0
    %482 = vmatpush2.bf16.msra.mxu0 0
    %483 = vmatprep.subr.bf16.mxu0 0
    %484 = vmatpush2.bf16.msra.mxu0 0
    %485 = vmatprep.subr.bf16.mxu0 0
    %486 = vmatpush2.bf16.msra.mxu0 0
    %487 = vmatprep.subr.bf16.mxu0 0
    %488 = vmatpush2.bf16.msra.mxu0 0
    %489 = vmatprep.subr.bf16.mxu0 0
    %490 = vmatpush2.bf16.msra.mxu0 0
    %491 = vmatprep.subr.bf16.mxu0 0
    %492 = vmatpush2.bf16.msra.mxu0 0
    %493 = vmatprep.mubr.bf16.mxu0 0
    %494 = vmatmul.mubr.bf16.gmra.mxu0 %v459
    %v495 = vpop.f32.mrf.mxu0
    %v496 = vadd.f32 %v456, %v495
    %v497 = vpop.f32.mrf.mxu0
    %v498 = vpop.f32.mrf.mxu0
    %v499 = vadd.f32 %v456, %v498
    %v500 = vpop.f32.mrf.mxu0
    %501 = vdwg.mxu0
    %502 = vst [vmem:[#allocation10] sm:$0xff] %v496
    %503 = vst [vmem:[#allocation10 + $0x8] sm:$0xff] %v499
    // Predicated region
    $region38: #{_forward_impl.1} parent=1 // pred_check
      _
    $region39: #{_forward_impl.1} parent=1 // pred_check_branch
      %505 = sbr.rel (0) target = $region41
    $region40: #{_forward_impl.1} parent=1 // pred_region
      %s507 = ssub.s32 256, 256
      %508 = vsyncadd [#allocation5], %s507
      %s509 = sshll.u32 [#allocation10], 4
      %s510 = int_to_ptr.vmem [resolvable:$true] %s509
      %515 = dma.vmem_to_hbm [thread:$0]  %s510, 256, %s6, [#allocation5], 128, 128, 8
    $region41: #{_forward_impl.1} parent=1 // pred_fallthru
      _
    // Predicated region
    $region42: #{_forward_impl.1} parent=1 // pred_check
      _
    $region43: #{_forward_impl.1} parent=1 // pred_check_branch
      %517 = sbr.rel (0) target = $region45
    $region44: #{_forward_impl.1} parent=1 // pred_region
      %518 = dma.done [#allocation5], 256
    $region45: #{_forward_impl.1} parent=1 // pred_fallthru
      _
    %519 = vsyncpa [#allocation4], 1
    %520 = vsyncpa [#allocation9], 1
    %521 = vsyncpa [#allocation5], 1
    %522 = vsyncpa [#allocation6], 1

</llo_original>
